<compile_context>
chip_gen: v7x
topology: tpu7x:2x2x1
jax: 0.10.0
libtpu: 0.0.40
codegen_flags: <defaults>
</compile_context>

<pallas_src>
import functools

import jax
import jax.numpy as jnp
import numpy as np
from jax.experimental import pallas as pl
from jax.experimental.pallas import tpu as pltpu


def _round_up(x, m):
    return ((x + m - 1) // m) * m


def _cdiv(a, b):
    return (a + b - 1) // b


_VMEM_CAP_CACHE = None


def _vmem_capacity_bytes():
    """Physical VMEM per TensorCore; conservative (v7x, 64 MiB) fallback."""
    global _VMEM_CAP_CACHE
    if _VMEM_CAP_CACHE is None:
        try:
            cap = int(pltpu.get_tpu_info().vmem_capacity_bytes)
            _VMEM_CAP_CACHE = min(max(cap, 32 * 1024 * 1024), 128 * 1024 * 1024)
        except Exception:
            _VMEM_CAP_CACHE = 64 * 1024 * 1024
    return _VMEM_CAP_CACHE


# ----------------------------------------------------------------------------
# Kernel 1a: featured ntypes,  h_f @ W  with W fully VMEM-resident.
# Grid over M only; bf16 cast of the activation tile happens in-kernel; MXU
# matmul with f32 accumulation; output stays in the activation dtype (f32).
# ----------------------------------------------------------------------------
def _matmul_resident_kernel(a_ref, b_ref, o_ref):
    a = a_ref[...].astype(jnp.bfloat16)
    o_ref[...] = jnp.dot(a, b_ref[...],
                         preferred_element_type=jnp.float32).astype(o_ref.dtype)


def _feat_matmul_resident(h_f, w_bf16, *, tm_cap=512, vmem_budget=24 * 1024 * 1024):
    M, K = h_f.shape
    _, N = w_bf16.shape

    if M <= 8:
        tm = M                                   # single full-extent block
    else:
        # Split M into >= 2 blocks so both v7x TensorCores get work.
        tm = max(8, min(tm_cap, _round_up(_cdiv(M, 2), 8)))

    def _est(tm_):
        # double-buffered f32 A tile + double-buffered resident bf16 W
        # + double-buffered f32 output tile
        return 2 * tm_ * K * 4 + 2 * K * N * 2 + 2 * tm_ * N * 4

    while tm > 16 and _est(tm) > vmem_budget:
        tm = max(16, _round_up(tm // 2, 8))

    vmem_limit = int(min(max(_est(tm) + (4 << 20), 16 << 20), 32 << 20))
    grid_m = _cdiv(M, tm)

    return pl.pallas_call(
        _matmul_resident_kernel,
        out_shape=jax.ShapeDtypeStruct((M, N), h_f.dtype),
        grid_spec=pltpu.PrefetchScalarGridSpec(
            num_scalar_prefetch=0,
            grid=(grid_m,),
            in_specs=[
                pl.BlockSpec((tm, K), lambda i: (i, 0)),
                pl.BlockSpec((K, N), lambda i: (0, 0)),   # W resident, fetched once
            ],
            out_specs=pl.BlockSpec((tm, N), lambda i: (i, 0)),
        ),
        compiler_params=pltpu.CompilerParams(
            dimension_semantics=("parallel",),
            vmem_limit_bytes=vmem_limit),
    )(h_f, w_bf16)


# ----------------------------------------------------------------------------
# Kernel 1b: fallback tiled k-reduction matmul for weights too big for VMEM.
# ----------------------------------------------------------------------------
def _matmul_tiled_kernel(a_ref, b_ref, o_ref, acc_ref):
    @pl.when(pl.program_id(2) == 0)
    def _():
        acc_ref[...] = jnp.zeros_like(acc_ref)

    acc_ref[...] += jnp.dot(a_ref[...].astype(jnp.bfloat16), b_ref[...],
                            preferred_element_type=jnp.float32)

    @pl.when(pl.program_id(2) == pl.num_programs(2) - 1)
    def _():
        o_ref[...] = acc_ref[...].astype(o_ref.dtype)


def _feat_matmul_tiled(h_f, w_bf16, *, tm=512, tn=512, tk=512):
    M, K = h_f.shape
    _, N = w_bf16.shape

    if M <= 8:
        tm = M
    else:
        tm = max(8, min(tm, _round_up(_cdiv(M, 2), 8)))
    tn = min(tn, _round_up(N, 128))
    tk = min(tk, _round_up(K, 128))

    # Ragged M / N blocks are safe (garbage rows/cols are masked on writeback),
    # but the reduction axis must not see garbage: pad K to a tile multiple.
    # TODO(synk): mask the ragged K tile in-kernel to avoid this pad entirely.
    Kp = _round_up(K, tk)
    a, b = h_f, w_bf16
    if Kp != K:
        a = jnp.pad(a, ((0, 0), (0, Kp - K)))
        b = jnp.pad(b, ((0, Kp - K), (0, 0)))

    est = 2 * tm * tk * 4 + 2 * tk * tn * 2 + 2 * tm * tn * 4 + tm * tn * 4
    vmem_limit = int(min(max(est + (4 << 20), 16 << 20), 32 << 20))

    return pl.pallas_call(
        _matmul_tiled_kernel,
        out_shape=jax.ShapeDtypeStruct((M, N), h_f.dtype),
        grid_spec=pltpu.PrefetchScalarGridSpec(
            num_scalar_prefetch=0,
            grid=(_cdiv(M, tm), _cdiv(N, tn), Kp // tk),
            in_specs=[pl.BlockSpec((tm, tk), lambda i, j, k: (i, k)),
                      pl.BlockSpec((tk, tn), lambda i, j, k: (k, j))],
            out_specs=pl.BlockSpec((tm, tn), lambda i, j, k: (i, j)),
            scratch_shapes=[pltpu.VMEM((tm, tn), jnp.float32)],
        ),
        compiler_params=pltpu.CompilerParams(
            dimension_semantics=("parallel", "parallel", "arbitrary"),
            vmem_limit_bytes=vmem_limit),
    )(a, b)


_B_RESIDENT_MAX_BYTES = 8 * 1024 * 1024   # keep W fully resident below this


def _feat_matmul_impl(h_f, w):
    M, K = h_f.shape
    K2, N = w.shape
    assert K == K2
    w = w.astype(jnp.bfloat16)                # no-op: W is stored in bf16
    if K * N * 2 <= _B_RESIDENT_MAX_BYTES:
        return _feat_matmul_resident(h_f, w)
    return _feat_matmul_tiled(h_f, w)


feat_matmul = jax.jit(_feat_matmul_impl)


# ----------------------------------------------------------------------------
# Kernel 2: row gather   table[node_ids]   (featureless ntypes, mini-batch).
# ids are scalar-prefetched into SMEM.  Each grid step issues `block_ids`
# concurrent row DMAs straight into the output block (no staging buffer) and
# waits on the same descriptors.  The table is either a raw HBM ref (pl.ANY)
# or, when small enough, a single VMEM-resident block (local row copies).
# ----------------------------------------------------------------------------
def _gather_kernel(ids_ref, table_ref, out_ref, sems, *, block_ids):
    base = pl.program_id(0) * block_ids
    copies = []
    for t in range(block_ids):                # issue all row DMAs, keep in flight
        cp = pltpu.make_async_copy(table_ref.at[ids_ref[base + t]],
                                   out_ref.at[t], sems.at[t])
        cp.start()
        copies.append(cp)
    for cp in copies:                         # reuse the original descriptors
        cp.wait()


def _pick_block_ids(n_ids, cap):
    if n_ids <= 8:
        return n_ids                          # single full-extent block
    # >= 2 blocks so both v7x TensorCores get work; multiple of 8 sublanes.
    return max(8, min(cap, _round_up(_cdiv(n_ids, 2), 8)))


@functools.partial(jax.jit, static_argnames=("table_resident",))
def _embed_gather_jit(table, node_ids, table_resident):
    n_ids = int(node_ids.shape[0])
    num_nodes, emb_dim = table.shape
    if n_ids == 0:
        return jnp.zeros((0, emb_dim), table.dtype)

    block_ids = _pick_block_ids(n_ids, cap=32 if table_resident else 64)
    n_pad = _round_up(n_ids, block_ids)
    ids = node_ids.astype(jnp.int32)
    if n_pad != n_ids:
        ids = jnp.pad(ids, (0, n_pad - n_ids))   # pad with row 0 (a valid row)
    n_blocks = n_pad // block_ids
    itemsize = table.dtype.itemsize

    if table_resident:
        table_spec = pl.BlockSpec((num_nodes, emb_dim), lambda i, ids: (0, 0))
        needed = 2 * num_nodes * emb_dim * itemsize \
            + 2 * block_ids * emb_dim * itemsize + (1 << 20)
        vmem_limit = int(min(max(needed, 16 << 20), _vmem_capacity_bytes() // 2))
        cparams = pltpu.CompilerParams(dimension_semantics=("parallel",),
                                       vmem_limit_bytes=vmem_limit)
    else:
        table_spec = pl.BlockSpec(memory_space=pl.ANY)   # table stays in HBM
        cparams = pltpu.CompilerParams(dimension_semantics=("parallel",))

    kernel = functools.partial(_gather_kernel, block_ids=block_ids)
    return pl.pallas_call(
        kernel,
        out_shape=jax.ShapeDtypeStruct((n_ids, emb_dim), table.dtype),
        grid_spec=pltpu.PrefetchScalarGridSpec(
            num_scalar_prefetch=1,
            grid=(n_blocks,),
            in_specs=[table_spec],
            out_specs=pl.BlockSpec((block_ids, emb_dim), lambda i, ids: (i, 0)),
            scratch_shapes=[pltpu.SemaphoreType.DMA((block_ids,))],
        ),
        compiler_params=cparams,
    )(ids, table)


def embed_gather(table, node_ids, table_resident=None):
    if table_resident is None:
        table_bytes = table.shape[0] * table.shape[1] * table.dtype.itemsize
        # Generation-aware: ~10 MiB tables resident on v7x, ~21 MiB on v5e/v6e.
        table_resident = table_bytes <= _vmem_capacity_bytes() // 6
    return _embed_gather_jit(table, node_ids, table_resident=bool(table_resident))


# ----------------------------------------------------------------------------
# Module-equivalent wrapper
# ----------------------------------------------------------------------------
def xavier_uniform(key, shape, dtype=jnp.float32):
    fan_in, fan_out = shape[0], shape[1]
    bound = float(np.sqrt(6.0 / (fan_in + fan_out)))
    return jax.random.uniform(key, shape, dtype, minval=-bound, maxval=bound)


class MiniBatchRelGraphEmbedPallas:
    """Pallas port of MiniBatchRelGraphEmbed.

    graph_meta: dict  ntype -> {"num_nodes": int, "feat_dim": int or None}
      feat_dim is not None  <=>  the ntype carries node features 'h_f'.
    """

    def __init__(self, graph_meta, embed_size, key):
        self.graph_meta = graph_meta
        self.embed_size = embed_size
        self.embeds = {}
        for ntype, meta in graph_meta.items():
            key, sub = jax.random.split(key)
            if meta["feat_dim"] is not None:
                # Projection weight: store in bf16 once (MXU operand) so the
                # matmul wrapper never re-casts per call.
                w = xavier_uniform(sub, (meta["feat_dim"], embed_size))
                self.embeds[ntype] = w.astype(jnp.bfloat16)
            else:
                # Featureless embedding table (the output itself): keep f32.
                self.embeds[ntype] = xavier_uniform(
                    sub, (meta["num_nodes"], embed_size))

    def forward(self, src_data, full=False):
        """src_data: dict ntype -> {"h_f": array or None, "nid": int32 ids or None}."""
        emb = {}
        for ntype, data in src_data.items():
            if data.get("h_f", None) is not None:
                emb[ntype] = feat_matmul(data["h_f"], self.embeds[ntype])
            elif not full:
                emb[ntype] = embed_gather(self.embeds[ntype], data["nid"])
            else:
                # table[arange(N)] is the identity gather: return the table.
                emb[ntype] = self.embeds[ntype]
        return emb


# ----------------------------------------------------------------------------
if __name__ == "__main__":
    key = jax.random.PRNGKey(0)

    EMBED = 128
    # Synthetic heterograph: "paper" nodes have features, "author" nodes do not.
    graph_meta = {
        "paper":  {"num_nodes": 64, "feat_dim": 256},
        "author": {"num_nodes": 96, "feat_dim": None},
    }

    key, k_mod, k_feat, k_ids = jax.random.split(key, 4)
    module = MiniBatchRelGraphEmbedPallas(graph_meta, EMBED, k_mod)

    paper_feat = jax.random.normal(
        k_feat, (graph_meta["paper"]["num_nodes"], graph_meta["paper"]["feat_dim"]),
        dtype=jnp.float32)
    author_ids = jax.random.randint(
        k_ids, (16,), 0, graph_meta["author"]["num_nodes"], dtype=jnp.int32)

    src_data = {
        "paper":  {"h_f": paper_feat, "nid": None},
        "author": {"h_f": None,       "nid": author_ids},
    }

    # Mini-batch forward (full=False): matmul + VMEM-resident-table gather.
    emb = module.forward(src_data, full=False)
    jax.block_until_ready(emb)

    # Full-graph forward for the featureless type (full=True): identity.
    emb_full = module.forward({"author": {"h_f": None, "nid": None}}, full=True)
    jax.block_until_ready(emb_full)

    # Also exercise the HBM-row-DMA gather path explicitly (forced).
    emb_author_hbm = embed_gather(module.embeds["author"], author_ids,
                                  table_resident=False)
    jax.block_until_ready(emb_author_hbm)

    # Reference checks in plain JAX.
    w_paper = module.embeds["paper"]                      # bf16 parameter
    ref_paper_bf16 = jnp.dot(paper_feat.astype(jnp.bfloat16), w_paper,
                             preferred_element_type=jnp.float32)
    ref_paper_f32 = paper_feat @ w_paper.astype(jnp.float32)
    ref_author = module.embeds["author"][author_ids]

    assert emb["paper"].shape == (64, EMBED) and emb["paper"].dtype == jnp.float32
    assert emb["author"].shape == (16, EMBED)
    assert emb_full["author"].shape == (96, EMBED)
    # MXU bf16 operands / f32 accumulation: tight vs bf16 ref, loose vs f32 ref.
    assert jnp.allclose(emb["paper"], ref_paper_bf16, atol=1e-2, rtol=1e-2)
    assert jnp.allclose(emb["paper"], ref_paper_f32, atol=8e-2, rtol=8e-2)
    assert jnp.array_equal(emb["author"], ref_author)
    assert jnp.array_equal(emb_author_hbm, ref_author)
    assert jnp.array_equal(emb_full["author"], module.embeds["author"])

    print("KERNEL_OK")
</pallas_src>

<mosaic_0001>
module attributes {stable_mosaic.version = 11 : i64} {
  func.func @_matmul_resident_kernel(%arg0: i32, %arg1: memref<32x256xf32, #tpu.memory_space<vmem>>, %arg2: memref<256x128xbf16, #tpu.memory_space<vmem>>, %arg3: memref<32x128xf32, #tpu.memory_space<vmem>>) attributes {dimension_semantics = [#tpu.dimension_semantics<parallel>], iteration_bounds = array<i64: 2>, scalar_prefetch = 0 : i64, scratch_operands = 0 : i64, tpu.core_type = #tpu.core_type<tc>, window_params = [{transform_indices = @transform_0, window_bounds = array<i64: 32, 256>}, {pipeline_mode = #tpu.pipeline_mode<synchronous>, transform_indices = @transform_1, window_bounds = array<i64: 256, 128>}, {transform_indices = @transform_2, window_bounds = array<i64: 32, 128>}]} {
    %c0 = arith.constant 0 : index
    %c0_0 = arith.constant 0 : index
    %0 = vector.load %arg1[%c0, %c0_0] : memref<32x256xf32, #tpu.memory_space<vmem>>, vector<32x256xf32>
    %1 = arith.truncf %0 : vector<32x256xf32> to vector<32x256xbf16>
    %c0_1 = arith.constant 0 : index
    %c0_2 = arith.constant 0 : index
    %2 = vector.load %arg2[%c0_1, %c0_2] : memref<256x128xbf16, #tpu.memory_space<vmem>>, vector<256x128xbf16>
    %cst = arith.constant dense<0.000000e+00> : vector<32x128xf32>
    %3 = tpu.matmul %1, %2, %cst {dimension_numbers = #tpu.dot_dimension_numbers<[1], [0], [0], [1], [0, 0, 1, 1], [], []>} : vector<32x256xbf16>, vector<256x128xbf16>, vector<32x128xf32> -> vector<32x128xf32>
    %c0_3 = arith.constant 0 : index
    %c0_4 = arith.constant 0 : index
    %4 = vector.load %arg3[%c0_3, %c0_4] : memref<32x128xf32, #tpu.memory_space<vmem>>, vector<32x128xf32>
    tpu.vector_store %arg3[%c0_3, %c0_4], %3 {strides = array<i32>} : memref<32x128xf32, #tpu.memory_space<vmem>>, vector<32x128xf32>,
    return
  }
  func.func @transform_0(%arg0: i32) -> (i32, i32) {
    %c0_i32 = arith.constant 0 : i32
    %c0_i32_0 = arith.constant 0 : i32
    return %arg0, %c0_i32 : i32, i32
  }
  func.func @transform_1(%arg0: i32) -> (i32, i32) {
    %c0_i32 = arith.constant 0 : i32
    %c0_i32_0 = arith.constant 0 : i32
    %c0_i32_1 = arith.constant 0 : i32
    return %c0_i32, %c0_i32_0 : i32, i32
  }
  func.func @transform_2(%arg0: i32) -> (i32, i32) {
    %c0_i32 = arith.constant 0 : i32
    %c0_i32_0 = arith.constant 0 : i32
    return %arg0, %c0_i32 : i32, i32
  }
}

</mosaic_0001>

<llo_original>
// kernel: _feat_matmul_impl.1
$region0: #{_feat_matmul_impl.1}
  #allocation0 [shape = 'u32[]', space=smem, size = 0x4, offset = 0x4, fixed_abs, tag = 'smem constant byte address 0x4 - core index']
  #allocation1 [shape = 'u32[144,128]{1,0:T(1,128)}', space=vmem, size = 0x12000, scoped, tag = 'internal scratch']
  %s0 = inlined_call_operand.hbm [shape: f32[64,256], index: 0, kind: input, shape index: {}]
  %s1 = inlined_call_operand.hbm [shape: bf16[256,128], index: 1, kind: input, shape index: {}]
  %s2 = inlined_call_operand.hbm [shape: f32[64,128], index: 2, kind: output, shape index: {}]
  %s3 = sld [smem:[#allocation0]]
  $region49: #{_feat_matmul_impl.1} parent=0
    _
  %s5 = ssub.s32 1, %s3
  %s6 = scalar_select 0, %s5, %s3
  $region1: #{_feat_matmul_impl.1} parent=0
    #allocation2 [shape = 'u8[65536]{0}', space=vmem, size = 0x10000, scoped, tag = 'input window, operand 0']
    #allocation3 [shape = 's32[2]{0}', space=sflag, size = 0x8, scoped, tag = 'scoped memory for _feat_matmul_impl.1']
    #allocation4 [shape = 's32[2]{0}', space=sflag, size = 0x8, scoped, tag = 'scoped memory for _feat_matmul_impl.1']
    #allocation5 [shape = 'u8[65536]{0}', space=vmem, size = 0x10000, scoped, tag = 'input window, operand 1, single buffered']
    #allocation6 [shape = 's32[1]{0}', space=sflag, size = 0x4, scoped, tag = 'scoped memory for _feat_matmul_impl.1']
    #allocation7 [shape = 'u8[32768]{0}', space=vmem, size = 0x8000, scoped, tag = 'output window, operand 0']
    %7 = vsyncpa [#allocation3], 0
    %s8 = scalar_lea.sflag [#allocation3], 1
    %9 = vsyncpa %s8, 0
    %10 = vsyncpa [#allocation6], 0
    %11 = vsyncpa [#allocation4], 0
    %s12 = scalar_lea.sflag [#allocation4], 1
    %13 = vsyncpa %s12, 0
    loop: start=0, step=1, limit=4
    $region2: #{_feat_matmul_impl.1} parent=1 // loop_pre_header
      _
    $region3: #{_feat_matmul_impl.1} parent=1 // loop_header
      %s15 = sphi 0, %s19
      %p16 = scmp.ge.s32.totalorder %s15, 4
      %s25 = sphi 0, %s27
      %s28 = sphi 0, %s25
      %s29 = sphi 0, %s28
      %s45 = sphi 0, %s29
      %s49 = sphi 0, %s49
      %s51 = sphi 0, %s49
      %s52 = sphi 0, %s51
      %s66 = sphi 0, %s52
      %s72 = sphi 0, %s74
      %s75 = sphi 0, %s72
      %s76 = sphi 0, %s75
      %s92 = sphi 0, %s76
    $region4: #{_feat_matmul_impl.1} parent=1 // loop_header_branch
      %18 = sbr.rel (%p16) target = $region8
    $region5: #{_feat_matmul_impl.1} parent=1 // loop_body
      %s20 = ssub.s32 %s15, 1
      %s21 = ssub.s32 %s15, 2
      %s22 = sadd.s32 %s15, 1
      %s23 = ssub.s32 %s15, %s22
      %p24 = scmp.eq.s32.totalorder %s23, 0
      %s26 = sadd.s32 %s25, 1
      %s27 = scalar_select %p24, %s25, %s26
      %p30 = pneg %p24
      %p31 = scmp.eq.s32.totalorder %s15, 1
      %p32 = por %p30, %p31
      %p33 = scmp.ne.s32.totalorder %s25, %s28
      %p34 = scmp.eq.s32.totalorder %s15, 0
      %p35 = por %p33, %p34
      %p36 = scmp.ne.s32.totalorder %s25, %s28
      %p37 = scmp.eq.s32.totalorder %s20, 1
      %p38 = por %p36, %p37
      %p39 = scmp.ne.s32.totalorder %s28, %s29
      %p40 = scmp.eq.s32.totalorder %s20, 0
      %p41 = por %p39, %p40
      %p42 = scmp.ne.s32.totalorder %s28, %s29
      %p43 = scmp.eq.s32.totalorder %s21, 1
      %p44 = por %p42, %p43
      %p46 = scmp.ne.s32.totalorder %s29, %s45
      %p47 = scmp.eq.s32.totalorder %s21, 0
      %p48 = por %p46, %p47
      %s50 = sadd.s32 %s49, 1
      %p53 = scmp.eq.s32.totalorder %s15, 1
      %p54 = scmp.ne.s32.totalorder %s49, %s51
      %p55 = scmp.eq.s32.totalorder %s15, 0
      %p56 = por %p54, %p55
      %p57 = scmp.ne.s32.totalorder %s49, %s51
      %p58 = scmp.eq.s32.totalorder %s20, 1
      %p59 = por %p57, %p58
      %p60 = scmp.ne.s32.totalorder %s51, %s52
      %p61 = scmp.eq.s32.totalorder %s20, 0
      %p62 = por %p60, %p61
      %p63 = scmp.ne.s32.totalorder %s51, %s52
      %p64 = scmp.eq.s32.totalorder %s21, 1
      %p65 = por %p63, %p64
      %p67 = scmp.ne.s32.totalorder %s52, %s66
      %p68 = scmp.eq.s32.totalorder %s21, 0
      %p69 = por %p67, %p68
      %s70 = ssub.s32 %s15, %s22
      %p71 = scmp.eq.s32.totalorder %s70, 0
      %s73 = sadd.s32 %s72, 1
      %s74 = scalar_select %p71, %s72, %s73
      %p77 = pneg %p71
      %p78 = scmp.eq.s32.totalorder %s15, 1
      %p79 = por %p77, %p78
      %p80 = scmp.ne.s32.totalorder %s72, %s75
      %p81 = scmp.eq.s32.totalorder %s15, 0
      %p82 = por %p80, %p81
      %p83 = scmp.ne.s32.totalorder %s72, %s75
      %p84 = scmp.eq.s32.totalorder %s20, 1
      %p85 = por %p83, %p84
      %p86 = scmp.ne.s32.totalorder %s75, %s76
      %p87 = scmp.eq.s32.totalorder %s20, 0
      %p88 = por %p86, %p87
      %p89 = scmp.ne.s32.totalorder %s75, %s76
      %p90 = scmp.eq.s32.totalorder %s21, 1
      %p91 = por %p89, %p90
      %p93 = scmp.ne.s32.totalorder %s76, %s92
      %p94 = scmp.eq.s32.totalorder %s21, 0
      %p95 = por %p93, %p94
      %p96 = scmp.le.s32.totalorder 1, %s15
      %p97 = scmp.lt.s32.totalorder %s15, 3
      %p98 = pnand %p96, %p97
      %p99 = pneg %p98
      // Predicated region
      $region9: #{_feat_matmul_impl.1} parent=5 // pred_check
        _
      $region10: #{_feat_matmul_impl.1} parent=5 // pred_check_branch
        %101 = sbr.rel (%p98) target = $region12
      $region11: #{_feat_matmul_impl.1} parent=5 // pred_region
        %s102 = ssub.s32 %s15, 1
        // Predicated region
        $region13: #{_feat_matmul_impl.1} parent=11 // pred_check
          %p103 = pneg %p62
        $region14: #{_feat_matmul_impl.1} parent=11 // pred_check_branch
          %105 = sbr.rel (%p103) target = $region16
        $region15: #{_feat_matmul_impl.1} parent=11 // pred_region
          %s107 = ssub.s32 2048, 2048
          %108 = vsyncadd [#allocation6], %s107
          %s109 = sshll.u32 [#allocation5], 4
          %s110 = int_to_ptr.vmem [resolvable:$true] %s109
          %115 = dma.hbm_to_vmem [thread:$0]  %s1, 2048, %s110, [#allocation6], 64, 64, 4
        $region16: #{_feat_matmul_impl.1} parent=11 // pred_fallthru
          _
      $region12: #{_feat_matmul_impl.1} parent=5 // pred_fallthru
        _
      %p116 = scmp.lt.s32.totalorder %s15, 2
      // Predicated region
      $region17: #{_feat_matmul_impl.1} parent=5 // pred_check
        %p117 = pneg %p116
      $region18: #{_feat_matmul_impl.1} parent=5 // pred_check_branch
        %119 = sbr.rel (%p117) target = $region20
      $region19: #{_feat_matmul_impl.1} parent=5 // pred_region
        // Predicated region
        $region21: #{_feat_matmul_impl.1} parent=19 // pred_check
          %p120 = pneg %p35
        $region22: #{_feat_matmul_impl.1} parent=19 // pred_check_branch
          %122 = sbr.rel (%p120) target = $region24
        $region23: #{_feat_matmul_impl.1} parent=19 // pred_region
          %s123 = sand.u32 %s25, 1
          %s124 = scalar_lea.sflag [#allocation3], %s123
          %s125 = sand.u32 %s25, 1
          %s126 = smul.addr %s125, 64
          %s127 = scalar_lea.vmem [#allocation2], %s126
          %s128 = smul.u32 4, %s15
          %s130 = ssub.s32 1024, 1024
          %131 = vsyncadd %s124, %s130
          %s132 = smul.addr %s128, 2
          %s133 = smul.addr %s132, 128
          %s134 = scalar_lea.hbm %s0, %s133
          %s135 = sshll.u32 %s127, 4
          %s136 = int_to_ptr.vmem [resolvable:$true] %s135
          %141 = dma.hbm_to_vmem [thread:$0]  %s134, 1024, %s136, %s124, 256, 256, 16
        $region24: #{_feat_matmul_impl.1} parent=19 // pred_fallthru
          _
      $region20: #{_feat_matmul_impl.1} parent=5 // pred_fallthru
        _
      %p142 = scmp.le.s32.totalorder 1, %s15
      %p143 = scmp.lt.s32.totalorder %s15, 3
      %p144 = pnand %p142, %p143
      %p145 = pneg %p144
      // Predicated region
      $region25: #{_feat_matmul_impl.1} parent=5 // pred_check
        _
      $region26: #{_feat_matmul_impl.1} parent=5 // pred_check_branch
        %147 = sbr.rel (%p144) target = $region28
      $region27: #{_feat_matmul_impl.1} parent=5 // pred_region
        %s148 = ssub.s32 %s15, 1
        %s149 = sand.u32 %s28, 1
        %s150 = scalar_lea.sflag [#allocation3], %s149
        %s151 = sand.u32 %s28, 1
        %s152 = smul.addr %s151, 64
        %s153 = scalar_lea.vmem [#allocation2], %s152
        // Predicated region
        $region29: #{_feat_matmul_impl.1} parent=27 // pred_check
          %p154 = pneg %p41
        $region30: #{_feat_matmul_impl.1} parent=27 // pred_check_branch
          %156 = sbr.rel (%p154) target = $region32
        $region31: #{_feat_matmul_impl.1} parent=27 // pred_region
          %157 = dma.done %s150, 1024
        $region32: #{_feat_matmul_impl.1} parent=27 // pred_fallthru
          _
        // Predicated region
        $region33: #{_feat_matmul_impl.1} parent=27 // pred_check
          %p158 = pneg %p62
        $region34: #{_feat_matmul_impl.1} parent=27 // pred_check_branch
          %160 = sbr.rel (%p158) target = $region36
        $region35: #{_feat_matmul_impl.1} parent=27 // pred_region
          %161 = dma.done [#allocation6], 2048
        $region36: #{_feat_matmul_impl.1} parent=27 // pred_fallthru
          _
        %s162 = sand.u32 %s28, 1
        %s163 = scalar_lea.sflag [#allocation3], %s162
        %s164 = sand.u32 %s28, 1
        %s165 = smul.addr %s164, 64
        %s166 = scalar_lea.vmem [#allocation2], %s165
        %p167 = pneg %p41
        %p168 = pneg %p38
        %p169 = pneg %p62
        %p170 = pneg %p59
        %p171 = pneg %p88
        %p172 = pneg %p85
        %s173 = sand.u32 %s75, 1
        %s174 = scalar_lea.sflag [#allocation4], %s173
        %s175 = sand.u32 %s75, 1
        %s176 = smul.addr %s175, 32
        %s177 = scalar_lea.vmem [#allocation7], %s176
        %s178 = smul.u32 4, %s20
        %s179 = smul.u32 4, %s20
        %v181 = vld [vmem:[%s153] sm:$0xff]
        %v182 = vld [vmem:[%s153 + $0x8] sm:$0xff]
        %v183 = vld [vmem:[%s153 + $0x10] sm:$0xff]
        %v184 = vld [vmem:[%s153 + $0x18] sm:$0xff]
        %v185 = vld [vmem:[%s153 + $0x20] sm:$0xff]
        %v186 = vld [vmem:[%s153 + $0x28] sm:$0xff]
        %v187 = vld [vmem:[%s153 + $0x30] sm:$0xff]
        %v188 = vld [vmem:[%s153 + $0x38] sm:$0xff]
        %v189 = vpack.c.bf16 %v183, %v181
        %v190 = vpack.c.bf16 %v184, %v182
        %v191 = vpack.c.bf16 %v187, %v185
        %v192 = vpack.c.bf16 %v188, %v186
        %v193 = vld [vmem:[#allocation5] sm:$0xf]
        %v194 = vld [vmem:[#allocation5 + $0x4] sm:$0xf]
        %v195 = vld [vmem:[#allocation5 + $0x8] sm:$0xf]
        %v196 = vld [vmem:[#allocation5 + $0xc] sm:$0xf]
        %v197 = vld [vmem:[#allocation5 + $0x10] sm:$0xf]
        %v198 = vld [vmem:[#allocation5 + $0x14] sm:$0xf]
        %v199 = vld [vmem:[#allocation5 + $0x18] sm:$0xf]
        %v200 = vld [vmem:[#allocation5 + $0x1c] sm:$0xf]
        %v201 = vld [vmem:[#allocation5 + $0x20] sm:$0xf]
        %v202 = vld [vmem:[#allocation5 + $0x24] sm:$0xf]
        %v203 = vld [vmem:[#allocation5 + $0x28] sm:$0xf]
        %v204 = vld [vmem:[#allocation5 + $0x2c] sm:$0xf]
        %v205 = vld [vmem:[#allocation5 + $0x30] sm:$0xf]
        %v206 = vld [vmem:[#allocation5 + $0x34] sm:$0xf]
        %v207 = vld [vmem:[#allocation5 + $0x38] sm:$0xf]
        %v208 = vld [vmem:[#allocation5 + $0x3c] sm:$0xf]
        %v209 = vld [vmem:[#allocation5 + $0x40] sm:$0xf]
        %v210 = vld [vmem:[#allocation5 + $0x44] sm:$0xf]
        %v211 = vld [vmem:[#allocation5 + $0x48] sm:$0xf]
        %v212 = vld [vmem:[#allocation5 + $0x4c] sm:$0xf]
        %v213 = vld [vmem:[#allocation5 + $0x50] sm:$0xf]
        %v214 = vld [vmem:[#allocation5 + $0x54] sm:$0xf]
        %v215 = vld [vmem:[#allocation5 + $0x58] sm:$0xf]
        %v216 = vld [vmem:[#allocation5 + $0x5c] sm:$0xf]
        %v217 = vld [vmem:[#allocation5 + $0x60] sm:$0xf]
        %v218 = vld [vmem:[#allocation5 + $0x64] sm:$0xf]
        %v219 = vld [vmem:[#allocation5 + $0x68] sm:$0xf]
        %v220 = vld [vmem:[#allocation5 + $0x6c] sm:$0xf]
        %v221 = vld [vmem:[#allocation5 + $0x70] sm:$0xf]
        %v222 = vld [vmem:[#allocation5 + $0x74] sm:$0xf]
        %v223 = vld [vmem:[#allocation5 + $0x78] sm:$0xf]
        %v224 = vld [vmem:[#allocation5 + $0x7c] sm:$0xf]
        %v257 = vunpack.c.l.b16 %v193
        %v258 = vunpack.c.l.b16 %v194
        %v259 = vunpack.c.l.b16 %v195
        %v260 = vunpack.c.l.b16 %v196
        %v261 = vunpack.c.l.b16 %v197
        %v262 = vunpack.c.l.b16 %v198
        %v263 = vunpack.c.l.b16 %v199
        %v264 = vunpack.c.l.b16 %v200
        %v265 = vunpack.c.l.b16 %v201
        %v266 = vunpack.c.l.b16 %v202
        %v267 = vunpack.c.l.b16 %v203
        %v268 = vunpack.c.l.b16 %v204
        %v269 = vunpack.c.l.b16 %v205
        %v270 = vunpack.c.l.b16 %v206
        %v271 = vunpack.c.l.b16 %v207
        %v272 = vunpack.c.l.b16 %v208
        %v273 = vunpack.c.l.b16 %v209
        %v274 = vunpack.c.l.b16 %v210
        %v275 = vunpack.c.l.b16 %v211
        %v276 = vunpack.c.l.b16 %v212
        %v277 = vunpack.c.l.b16 %v213
        %v278 = vunpack.c.l.b16 %v214
        %v279 = vunpack.c.l.b16 %v215
        %v280 = vunpack.c.l.b16 %v216
        %v281 = vunpack.c.l.b16 %v217
        %v282 = vunpack.c.l.b16 %v218
        %v283 = vunpack.c.l.b16 %v219
        %v284 = vunpack.c.l.b16 %v220
        %v285 = vunpack.c.l.b16 %v221
        %v286 = vunpack.c.l.b16 %v222
        %v287 = vunpack.c.l.b16 %v223
        %v288 = vunpack.c.l.b16 %v224
        %v289 = vpack.c.b16 %v258, %v257
        %v290 = vpack.c.b16 %v260, %v259
        %v291 = vpack.c.b16 %v262, %v261
        %v292 = vpack.c.b16 %v264, %v263
        %v293 = vpack.c.b16 %v266, %v265
        %v294 = vpack.c.b16 %v268, %v267
        %v295 = vpack.c.b16 %v270, %v269
        %v296 = vpack.c.b16 %v272, %v271
        %v297 = vpack.c.b16 %v274, %v273
        %v298 = vpack.c.b16 %v276, %v275
        %v299 = vpack.c.b16 %v278, %v277
        %v300 = vpack.c.b16 %v280, %v279
        %v301 = vpack.c.b16 %v282, %v281
        %v302 = vpack.c.b16 %v284, %v283
        %v303 = vpack.c.b16 %v286, %v285
        %v304 = vpack.c.b16 %v288, %v287
        %321 = vmatprep.subr.bf16.mxu0 0
        %322 = vmatpush1.bf16.msra.mxu0 %v289
        %323 = vmatprep.subr.bf16.mxu0 0
        %324 = vmatpush1.bf16.msra.mxu0 %v290
        %325 = vmatprep.subr.bf16.mxu0 0
        %326 = vmatpush1.bf16.msra.mxu0 %v291
        %327 = vmatprep.subr.bf16.mxu0 0
        %328 = vmatpush1.bf16.msra.mxu0 %v292
        %329 = vmatprep.subr.bf16.mxu0 0
        %330 = vmatpush1.bf16.msra.mxu0 %v293
        %331 = vmatprep.subr.bf16.mxu0 0
        %332 = vmatpush1.bf16.msra.mxu0 %v294
        %333 = vmatprep.subr.bf16.mxu0 0
        %334 = vmatpush1.bf16.msra.mxu0 %v295
        %335 = vmatprep.subr.bf16.mxu0 0
        %336 = vmatpush1.bf16.msra.mxu0 %v296
        %337 = vmatprep.subr.bf16.mxu0 0
        %338 = vmatpush1.bf16.msra.mxu0 %v297
        %339 = vmatprep.subr.bf16.mxu0 0
        %340 = vmatpush1.bf16.msra.mxu0 %v298
        %341 = vmatprep.subr.bf16.mxu0 0
        %342 = vmatpush1.bf16.msra.mxu0 %v299
        %343 = vmatprep.subr.bf16.mxu0 0
        %344 = vmatpush1.bf16.msra.mxu0 %v300
        %345 = vmatprep.subr.bf16.mxu0 0
        %346 = vmatpush1.bf16.msra.mxu0 %v301
        %347 = vmatprep.subr.bf16.mxu0 0
        %348 = vmatpush1.bf16.msra.mxu0 %v302
        %349 = vmatprep.subr.bf16.mxu0 0
        %350 = vmatpush1.bf16.msra.mxu0 %v303
        %351 = vmatprep.subr.bf16.mxu0 0
        %352 = vmatpush1.bf16.msra.mxu0 %v304
        %353 = vmatprep.mubr.bf16.mxu0 %v190
        %354 = vmatmul.mubr.bf16.gmra.mrb[0].mxu0 %v189
        %v355 = vpop.f32.mrb[0].mxu0
        %v356 = vadd.f32 0.0, %v355
        %v357 = vpop.f32.mrb[0].mxu0
        %v358 = vpop.f32.mrb[0].mxu0
        %v359 = vadd.f32 0.0, %v358
        %v360 = vpop.f32.mrb[0].mxu0
        %361 = vmatprep.mubr.bf16.mxu0 %v192
        %362 = vmatmul.mubr.bf16.gmra.mrb[0].mxu0 %v191
        %v363 = vpop.f32.mrb[0].mxu0
        %v364 = vadd.f32 0.0, %v363
        %v365 = vpop.f32.mrb[0].mxu0
        %v366 = vpop.f32.mrb[0].mxu0
        %v367 = vadd.f32 0.0, %v366
        %v368 = vpop.f32.mrb[0].mxu0
        %369 = vdwg.mxu0
        %370 = vst [vmem:[%s177] sm:$0xff] %v356
        %371 = vst [vmem:[%s177 + $0x8] sm:$0xff] %v359
        %372 = vst [vmem:[%s177 + $0x10] sm:$0xff] %v364
        %373 = vst [vmem:[%s177 + $0x18] sm:$0xff] %v367
        %s374 = sand.u32 %s75, 1
        %s375 = scalar_lea.sflag [#allocation4], %s374
        %s376 = sand.u32 %s75, 1
        %s377 = smul.addr %s376, 32
        %s378 = scalar_lea.vmem [#allocation7], %s377
        // Predicated region
        $region37: #{_feat_matmul_impl.1} parent=27 // pred_check
          %p379 = pneg %p85
        $region38: #{_feat_matmul_impl.1} parent=27 // pred_check_branch
          %381 = sbr.rel (%p379) target = $region40
        $region39: #{_feat_matmul_impl.1} parent=27 // pred_region
          %s382 = smul.u32 4, %s20
          %s384 = ssub.s32 512, 512
          %385 = vsyncadd %s375, %s384
          %s386 = smul.addr %s382, 128
          %s387 = scalar_lea.hbm %s2, %s386
          %s388 = sshll.u32 %s378, 4
          %s389 = int_to_ptr.vmem [resolvable:$true] %s388
          %394 = dma.vmem_to_hbm [thread:$0]  %s389, 512, %s387, %s375, 128, 128, 8
        $region40: #{_feat_matmul_impl.1} parent=27 // pred_fallthru
          _
      $region28: #{_feat_matmul_impl.1} parent=5 // pred_fallthru
        _
      %p395 = scmp.le.s32.totalorder 2, %s15
      // Predicated region
      $region41: #{_feat_matmul_impl.1} parent=5 // pred_check
        %p396 = pneg %p395
      $region42: #{_feat_matmul_impl.1} parent=5 // pred_check_branch
        %398 = sbr.rel (%p396) target = $region44
      $region43: #{_feat_matmul_impl.1} parent=5 // pred_region
        %s399 = ssub.s32 %s15, 2
        // Predicated region
        $region45: #{_feat_matmul_impl.1} parent=43 // pred_check
          %p400 = pneg %p91
        $region46: #{_feat_matmul_impl.1} parent=43 // pred_check_branch
          %402 = sbr.rel (%p400) target = $region48
        $region47: #{_feat_matmul_impl.1} parent=43 // pred_region
          %s403 = sand.u32 %s76, 1
          %s404 = scalar_lea.sflag [#allocation4], %s403
          %s405 = sand.u32 %s76, 1
          %s406 = smul.addr %s405, 32
          %s407 = scalar_lea.vmem [#allocation7], %s406
          %408 = dma.done %s404, 512
        $region48: #{_feat_matmul_impl.1} parent=43 // pred_fallthru
          _
      $region44: #{_feat_matmul_impl.1} parent=5 // pred_fallthru
        _
    $region6: #{_feat_matmul_impl.1} parent=1 // loop_footer
      %s19 = sadd.s32 1, %s15
    $region7: #{_feat_matmul_impl.1} parent=1 // loop_footer_branch
      %14 = sbr.rel target = $region3
    $region8: #{_feat_matmul_impl.1} parent=1 // loop_exit
      _
    %409 = vsyncpa [#allocation3], 1
    %s410 = scalar_lea.sflag [#allocation3], 1
    %411 = vsyncpa %s410, 1
    %412 = vsyncpa [#allocation6], 1
    %413 = vsyncpa [#allocation4], 1
    %s414 = scalar_lea.sflag [#allocation4], 1
    %415 = vsyncpa %s414, 1

</llo_original>
